<compile_context>
chip_gen: v7x
topology: tpu7x:2x2x1
jax: 0.10.0
libtpu: 0.0.40
codegen_flags: <defaults>
</compile_context>

<pallas_src>
import functools

import jax
import jax.numpy as jnp
from jax.experimental import pallas as pl
from jax.experimental.pallas import tpu as pltpu


def _gat_kernel(x_ref, w_ref, g_ref, b_ref, o_ref, *, slab_projection):
    # x_ref: (TB, N, Din)  w_ref: (Din, Dp)  g_ref: (N, N)  b_ref: (1, Dp)
    # o_ref: (TB, N, Dp)   with Dp = Dout rounded up to a multiple of 128.
    TB, N, Din = x_ref.shape
    Dp = w_ref.shape[1]

    w = w_ref[...]                                    # (Din, Dp)
    graph = g_ref[...]                                # (N, N)
    bias = b_ref[...]                                 # (1, Dp)

    if slab_projection:
        # Hoisted projection: one slab matmul over all TB*N rows of this tile.
        # These reshapes only merge/split major dims (lane dim unchanged) and
        # are layout-free because N % 8 == 0.
        x_flat = x_ref[...].reshape(TB * N, Din)
        h = jnp.dot(x_flat, w, preferred_element_type=jnp.float32)
        h = h.reshape(TB, N, Dp)                      # (TB, N, Dp)
    else:
        # Fallback for N not a multiple of 8: avoid relayout-inducing reshapes.
        h = jnp.einsum("bnd,do->bno", x_ref[...], w,
                       preferred_element_type=jnp.float32)

    # scores = h @ h^T per batch (batched contraction over the lane-dense,
    # 128-aligned padded feature dim; pad columns are zero so values match).
    scores = jnp.einsum("bnd,bmd->bnm", h, h,
                        preferred_element_type=jnp.float32)   # (TB, N, N)

    # Faithful to the PyTorch module: multiply by adjacency, mask exact zeros.
    scores = scores * graph[None, :, :]
    scores = jnp.where(scores == 0.0, jnp.float32(-1e16), scores)

    # Numerically stable softmax statistics (f32).  The normalization is
    # deferred until after the second matmul (review item 1).
    m = jnp.max(scores, axis=-1, keepdims=True)
    e = jnp.exp(scores - m)                           # (TB, N, N)
    denom = jnp.sum(e, axis=-1, keepdims=True)        # (TB, N, 1)

    # result = (e @ h) / denom + b  ==  softmax(scores) @ h + b
    out = jnp.einsum("bnm,bmd->bnd", e, h,
                     preferred_element_type=jnp.float32)      # (TB, N, Dp)
    out = out * pl.reciprocal(denom, approx=False) + bias
    o_ref[...] = out.astype(o_ref.dtype)


def _tpu_generation_defaults():
    """Returns (tiling_budget_bytes, vmem_limit_bytes, min_grid_steps)."""
    kind = ""
    try:
        kind = jax.devices()[0].device_kind.lower()
    except Exception:
        pass
    if "v7" in kind:
        # v7x: 64 MiB VMEM per TensorCore, 2 TCs -> keep >= 2 steps per core.
        return 40 * 2**20, 48 * 2**20, 4
    # v5e / v6e (128 MiB VMEM, 1 TensorCore) and unknown devices.
    return 72 * 2**20, 96 * 2**20, 2


def _pick_batch_tile(B, N, Din, Dp, vmem_budget_bytes, min_grid_steps):
    """Pick how many batches each grid step processes (TB divides B)."""
    # f32 bytes per batch in the tile: double-buffered x/out blocks plus the
    # simultaneously-live intermediates (h, scores, e, unnormalized out).
    per_batch = 4 * (2 * N * Din + 2 * N * Dp      # pipelined x / out blocks
                     + N * Dp                      # h
                     + 2 * N * N                   # scores + e
                     + N * Dp)                     # unnormalized out
    # Grid-invariant operands still get the default 2-deep buffering, so count
    # them at 2x (review item: account for constant-operand double-buffering).
    shared = 4 * 2 * (Din * Dp + N * N + Dp)
    avail = max(vmem_budget_bytes - shared, per_batch)
    max_tb = max(1, avail // per_batch)
    # Keep >= min_grid_steps grid steps so the pipeline can double-buffer and
    # (on v7x) both TensorCores get >= 2 steps each.
    tb = int(min(max_tb, max(1, B // min_grid_steps)))
    tb = max(1, min(tb, B))
    while B % tb != 0:
        tb -= 1
    return tb


def graph_attention_layer(inputs, graph, weight, bias):
    """
    inputs: [B, N, Din] f32
    graph:  [N, N]      f32
    weight: [Dout, Din] f32  (PyTorch nn.Linear layout)
    bias:   [Dout]      f32
    returns [B, N, Dout] f32
    """
    B, N, Din = inputs.shape
    Dout = weight.shape[0]

    # Lane-dense layout: pad the output feature dim to a multiple of 128 with
    # zero columns (exact: pad columns stay zero through every op).
    Dp = ((Dout + 127) // 128) * 128
    w_t = jnp.asarray(weight).T                       # (Din, Dout)
    b1 = jnp.asarray(bias)                            # (Dout,)
    if Dp != Dout:
        w_t = jnp.pad(w_t, ((0, 0), (0, Dp - Dout)))
        b1 = jnp.pad(b1, (0, Dp - Dout))
    b2 = b1.reshape(1, Dp)                            # (1, Dp)

    vmem_budget, vmem_limit, min_steps = _tpu_generation_defaults()
    TB = _pick_batch_tile(B, N, Din, Dp, vmem_budget, min_steps)
    grid = (B // TB,)

    kernel = functools.partial(_gat_kernel, slab_projection=(N % 8 == 0))

    out_padded = pl.pallas_call(
        kernel,
        out_shape=jax.ShapeDtypeStruct((B, N, Dp), jnp.float32),
        grid_spec=pltpu.PrefetchScalarGridSpec(
            num_scalar_prefetch=0,
            grid=grid,
            in_specs=[
                pl.BlockSpec((TB, N, Din), lambda i: (i, 0, 0)),
                pl.BlockSpec((Din, Dp), lambda i: (0, 0)),
                pl.BlockSpec((N, N), lambda i: (0, 0)),
                pl.BlockSpec((1, Dp), lambda i: (0, 0)),
            ],
            out_specs=pl.BlockSpec((TB, N, Dp), lambda i: (i, 0, 0)),
        ),
        compiler_params=pltpu.CompilerParams(
            dimension_semantics=("parallel",),
            vmem_limit_bytes=vmem_limit,
        ),
    )(inputs, w_t, graph, b2)

    if Dp != Dout:
        return out_padded[..., :Dout]
    return out_padded


def reference(inputs, graph, weight, bias):
    h = jnp.einsum("bnd,od->bno", inputs, weight)
    scores = jnp.einsum("bno,bmo->bnm", h, h) * graph[None]
    scores = jnp.where(scores == 0.0, -1e16, scores)
    attn = jax.nn.softmax(scores, axis=2)
    return jnp.einsum("bnm,bmo->bno", attn, h) + bias


if __name__ == "__main__":
    B, N, Din, Dout = 2, 16, 8, 32

    key = jax.random.PRNGKey(0)
    k_x, k_g, k_w, k_b = jax.random.split(key, 4)

    inputs = jax.random.normal(k_x, (B, N, Din), dtype=jnp.float32)
    # Random 0/1 adjacency with self loops.
    graph = (jax.random.uniform(k_g, (N, N)) > 0.5).astype(jnp.float32)
    graph = jnp.maximum(graph, jnp.eye(N, dtype=jnp.float32))
    # Parameters (nn.init.normal_ -> standard normal), deterministic here.
    weight = jax.random.normal(k_w, (Dout, Din), dtype=jnp.float32)
    bias = jax.random.normal(k_b, (Dout,), dtype=jnp.float32)

    out = graph_attention_layer(inputs, graph, weight, bias)
    out = jax.block_until_ready(out)

    ref = reference(inputs, graph, weight, bias)
    assert out.shape == (B, N, Dout)
    assert jnp.allclose(out, ref, rtol=1e-4, atol=1e-4), "mismatch vs reference"

    print("KERNEL_OK")
</pallas_src>

<mosaic_0001>
module attributes {stable_mosaic.version = 11 : i64} {
  func.func @_gat_kernel(%arg0: i32, %arg1: memref<1x16x8xf32, #tpu.memory_space<vmem>>, %arg2: memref<8x128xf32, #tpu.memory_space<vmem>>, %arg3: memref<16x16xf32, #tpu.memory_space<vmem>>, %arg4: memref<1x128xf32, #tpu.memory_space<vmem>>, %arg5: memref<1x16x128xf32, #tpu.memory_space<vmem>>) attributes {dimension_semantics = [#tpu.dimension_semantics<parallel>], iteration_bounds = array<i64: 2>, scalar_prefetch = 0 : i64, scratch_operands = 0 : i64, tpu.core_type = #tpu.core_type<tc>, window_params = [{transform_indices = @transform_0, window_bounds = array<i64: 1, 16, 8>}, {pipeline_mode = #tpu.pipeline_mode<synchronous>, transform_indices = @transform_1, window_bounds = array<i64: 8, 128>}, {pipeline_mode = #tpu.pipeline_mode<synchronous>, transform_indices = @transform_2, window_bounds = array<i64: 16, 16>}, {pipeline_mode = #tpu.pipeline_mode<synchronous>, transform_indices = @transform_3, window_bounds = array<i64: 1, 128>}, {transform_indices = @transform_4, window_bounds = array<i64: 1, 16, 128>}]} {
    %c0 = arith.constant 0 : index
    %c0_0 = arith.constant 0 : index
    %0 = vector.load %arg2[%c0, %c0_0] : memref<8x128xf32, #tpu.memory_space<vmem>>, vector<8x128xf32>
    %c0_1 = arith.constant 0 : index
    %c0_2 = arith.constant 0 : index
    %1 = vector.load %arg3[%c0_1, %c0_2] : memref<16x16xf32, #tpu.memory_space<vmem>>, vector<16x16xf32>
    %c0_3 = arith.constant 0 : index
    %c0_4 = arith.constant 0 : index
    %2 = vector.load %arg4[%c0_3, %c0_4] : memref<1x128xf32, #tpu.memory_space<vmem>>, vector<1x128xf32>
    %c0_5 = arith.constant 0 : index
    %c0_6 = arith.constant 0 : index
    %c0_7 = arith.constant 0 : index
    %3 = vector.load %arg1[%c0_5, %c0_6, %c0_7] : memref<1x16x8xf32, #tpu.memory_space<vmem>>, vector<1x16x8xf32>
    %4 = vector.shape_cast %3 : vector<1x16x8xf32> to vector<16x8xf32>
    %cst = arith.constant dense<0.000000e+00> : vector<16x128xf32>
    %5 = tpu.matmul %4, %0, %cst {dimension_numbers = #tpu.dot_dimension_numbers<[1], [0], [0], [1], [0, 0, 1, 1], [], []>} : vector<16x8xf32>, vector<8x128xf32>, vector<16x128xf32> -> vector<16x128xf32>
    %6 = vector.shape_cast %5 : vector<16x128xf32> to vector<1x16x128xf32>
    "tpu.trace_start"() <{level = 10 : i32, message = "bnd,bmd->bnm"}> : () -> ()
    %cst_8 = arith.constant dense<0.000000e+00> : vector<1x16x16xf32>
    %7 = tpu.matmul %6, %6, %cst_8 {dimension_numbers = #tpu.dot_dimension_numbers<[2], [2], [1], [1], [0, 0, 0, 1, 1, 1], [0], [0]>} : vector<1x16x128xf32>, vector<1x16x128xf32>, vector<1x16x16xf32> -> vector<1x16x16xf32>
    "tpu.trace_stop"() : () -> ()
    %8 = vector.shape_cast %1 : vector<16x16xf32> to vector<1x16x16xf32>
    %9 = arith.mulf %7, %8 : vector<1x16x16xf32>
    %cst_9 = arith.constant 0.000000e+00 : f32
    %10 = vector.broadcast %cst_9 : f32 to vector<1x16x16xf32>
    %11 = arith.cmpf oeq, %9, %10 : vector<1x16x16xf32>
    %cst_10 = arith.constant -1.000000e+16 : f32
    %12 = vector.broadcast %cst_10 : f32 to vector<1x16x16xf32>
    %13 = arith.select %11, %12, %9 : vector<1x16x16xi1>, vector<1x16x16xf32>
    %cst_11 = arith.constant dense<0xFF800000> : vector<1x16xf32>
    %14 = vector.multi_reduction <maximumf>, %13, %cst_11 [2] : vector<1x16x16xf32> to vector<1x16xf32>
    %15 = vector.shape_cast %14 : vector<1x16xf32> to vector<1x16x1xf32>
    %16 = vector.broadcast %15 : vector<1x16x1xf32> to vector<1x16x16xf32>
    %17 = arith.subf %13, %16 : vector<1x16x16xf32>
    %18 = math.exp %17 : vector<1x16x16xf32>
    %cst_12 = arith.constant dense<0.000000e+00> : vector<1x16xf32>
    %19 = vector.multi_reduction <add>, %18, %cst_12 [2] : vector<1x16x16xf32> to vector<1x16xf32>
    %20 = vector.shape_cast %19 : vector<1x16xf32> to vector<1x16x1xf32>
    "tpu.trace_start"() <{level = 10 : i32, message = "bnm,bmd->bnd"}> : () -> ()
    %cst_13 = arith.constant dense<0.000000e+00> : vector<1x16x128xf32>
    %21 = tpu.matmul %18, %6, %cst_13 {dimension_numbers = #tpu.dot_dimension_numbers<[2], [1], [1], [2], [0, 0, 0, 1, 1, 2], [0], [0]>} : vector<1x16x16xf32>, vector<1x16x128xf32>, vector<1x16x128xf32> -> vector<1x16x128xf32>
    "tpu.trace_stop"() : () -> ()
    %22 = tpu.reciprocal %20 : vector<1x16x1xf32> -> vector<1x16x1xf32>
    %23 = vector.broadcast %22 : vector<1x16x1xf32> to vector<1x16x128xf32>
    %24 = arith.mulf %21, %23 : vector<1x16x128xf32>
    %25 = vector.shape_cast %2 : vector<1x128xf32> to vector<1x1x128xf32>
    %26 = vector.broadcast %25 : vector<1x1x128xf32> to vector<1x16x128xf32>
    %27 = arith.addf %24, %26 : vector<1x16x128xf32>
    %c0_14 = arith.constant 0 : index
    %c0_15 = arith.constant 0 : index
    %c0_16 = arith.constant 0 : index
    %28 = vector.load %arg5[%c0_14, %c0_15, %c0_16] : memref<1x16x128xf32, #tpu.memory_space<vmem>>, vector<1x16x128xf32>
    tpu.vector_store %arg5[%c0_14, %c0_15, %c0_16], %27 {strides = array<i32>} : memref<1x16x128xf32, #tpu.memory_space<vmem>>, vector<1x16x128xf32>,
    return
  }
  func.func @transform_0(%arg0: i32) -> (i32, i32, i32) {
    %c0_i32 = arith.constant 0 : i32
    %c0_i32_0 = arith.constant 0 : i32
    %c0_i32_1 = arith.constant 0 : i32
    return %arg0, %c0_i32, %c0_i32_0 : i32, i32, i32
  }
  func.func @transform_1(%arg0: i32) -> (i32, i32) {
    %c0_i32 = arith.constant 0 : i32
    %c0_i32_0 = arith.constant 0 : i32
    %c0_i32_1 = arith.constant 0 : i32
    return %c0_i32, %c0_i32_0 : i32, i32
  }
  func.func @transform_2(%arg0: i32) -> (i32, i32) {
    %c0_i32 = arith.constant 0 : i32
    %c0_i32_0 = arith.constant 0 : i32
    %c0_i32_1 = arith.constant 0 : i32
    return %c0_i32, %c0_i32_0 : i32, i32
  }
  func.func @transform_3(%arg0: i32) -> (i32, i32) {
    %c0_i32 = arith.constant 0 : i32
    %c0_i32_0 = arith.constant 0 : i32
    %c0_i32_1 = arith.constant 0 : i32
    return %c0_i32, %c0_i32_0 : i32, i32
  }
  func.func @transform_4(%arg0: i32) -> (i32, i32, i32) {
    %c0_i32 = arith.constant 0 : i32
    %c0_i32_0 = arith.constant 0 : i32
    %c0_i32_1 = arith.constant 0 : i32
    return %arg0, %c0_i32, %c0_i32_0 : i32, i32, i32
  }
}

</mosaic_0001>

<llo_original>
// kernel: tpu_custom_call.1
$region0: #{tpu_custom_call.1}
  #allocation0 [shape = 'u32[]', space=smem, size = 0x4, offset = 0x4, fixed_abs, tag = 'smem constant byte address 0x4 - core index']
  #allocation1 [shape = 'u32[144,128]{1,0:T(1,128)}', space=vmem, size = 0x12000, scoped, tag = 'internal scratch']
  %s0 = inlined_call_operand.hbm [shape: f32[2,16,8], index: 0, kind: input, shape index: {}]
  %s1 = inlined_call_operand.hbm [shape: f32[8,128], index: 1, kind: input, shape index: {}]
  %s2 = inlined_call_operand.hbm [shape: f32[16,16], index: 2, kind: input, shape index: {}]
  %s3 = inlined_call_operand.hbm [shape: f32[1,128], index: 3, kind: input, shape index: {}]
  %s4 = inlined_call_operand.hbm [shape: f32[2,16,128], index: 4, kind: output, shape index: {}]
  %s5 = sld [smem:[#allocation0]]
  $region65: #{tpu_custom_call.1} parent=0
    _
  %s7 = ssub.s32 1, %s5
  %s8 = scalar_select 0, %s7, %s5
  $region1: #{tpu_custom_call.1} parent=0
    #allocation2 [shape = 'u8[16384]{0}', space=vmem, size = 0x4000, scoped, tag = 'input window, operand 0']
    #allocation3 [shape = 's32[2]{0}', space=sflag, size = 0x8, scoped, tag = 'scoped memory for tpu_custom_call.1']
    #allocation4 [shape = 's32[2]{0}', space=sflag, size = 0x8, scoped, tag = 'scoped memory for tpu_custom_call.1']
    #allocation5 [shape = 'u8[4096]{0}', space=vmem, size = 0x1000, scoped, tag = 'input window, operand 1, single buffered']
    #allocation6 [shape = 's32[1]{0}', space=sflag, size = 0x4, scoped, tag = 'scoped memory for tpu_custom_call.1']
    #allocation7 [shape = 'u8[8192]{0}', space=vmem, size = 0x2000, scoped, tag = 'input window, operand 2, single buffered']
    #allocation8 [shape = 'u8[512]{0}', space=vmem, size = 0x400, scoped, tag = 'input window, operand 3, single buffered']
    #allocation9 [shape = 's32[1]{0}', space=sflag, size = 0x4, scoped, tag = 'scoped memory for tpu_custom_call.1']
    #allocation10 [shape = 'u8[16384]{0}', space=vmem, size = 0x4000, scoped, tag = 'output window, operand 0']
    %9 = vsyncpa [#allocation3], 0
    %s10 = scalar_lea.sflag [#allocation3], 1
    %11 = vsyncpa %s10, 0
    %12 = vsyncpa [#allocation6], 0
    %13 = vsyncpa [#allocation9], 0
    %14 = vsyncpa [#allocation4], 0
    %s15 = scalar_lea.sflag [#allocation4], 1
    %16 = vsyncpa %s15, 0
    loop: start=0, step=1, limit=4
    $region2: #{tpu_custom_call.1} parent=1 // loop_pre_header
      _
    $region3: #{tpu_custom_call.1} parent=1 // loop_header
      %s18 = sphi 0, %s22
      %p19 = scmp.ge.s32.totalorder %s18, 4
      %s28 = sphi 0, %s30
      %s31 = sphi 0, %s28
      %s32 = sphi 0, %s31
      %s48 = sphi 0, %s32
      %s52 = sphi 0, %s52
      %s54 = sphi 0, %s52
      %s55 = sphi 0, %s54
      %s69 = sphi 0, %s55
      %s73 = sphi 0, %s73
      %s75 = sphi 0, %s73
      %s76 = sphi 0, %s75
      %s90 = sphi 0, %s76
      %s94 = sphi 0, %s94
      %s96 = sphi 0, %s94
      %s97 = sphi 0, %s96
      %s111 = sphi 0, %s97
      %s117 = sphi 0, %s119
      %s120 = sphi 0, %s117
      %s121 = sphi 0, %s120
      %s137 = sphi 0, %s121
    $region4: #{tpu_custom_call.1} parent=1 // loop_header_branch
      %21 = sbr.rel (%p19) target = $region8
    $region5: #{tpu_custom_call.1} parent=1 // loop_body
      %s23 = ssub.s32 %s18, 1
      %s24 = ssub.s32 %s18, 2
      %s25 = sadd.s32 %s18, 1
      %s26 = ssub.s32 %s18, %s25
      %p27 = scmp.eq.s32.totalorder %s26, 0
      %s29 = sadd.s32 %s28, 1
      %s30 = scalar_select %p27, %s28, %s29
      %p33 = pneg %p27
      %p34 = scmp.eq.s32.totalorder %s18, 1
      %p35 = por %p33, %p34
      %p36 = scmp.ne.s32.totalorder %s28, %s31
      %p37 = scmp.eq.s32.totalorder %s18, 0
      %p38 = por %p36, %p37
      %p39 = scmp.ne.s32.totalorder %s28, %s31
      %p40 = scmp.eq.s32.totalorder %s23, 1
      %p41 = por %p39, %p40
      %p42 = scmp.ne.s32.totalorder %s31, %s32
      %p43 = scmp.eq.s32.totalorder %s23, 0
      %p44 = por %p42, %p43
      %p45 = scmp.ne.s32.totalorder %s31, %s32
      %p46 = scmp.eq.s32.totalorder %s24, 1
      %p47 = por %p45, %p46
      %p49 = scmp.ne.s32.totalorder %s32, %s48
      %p50 = scmp.eq.s32.totalorder %s24, 0
      %p51 = por %p49, %p50
      %s53 = sadd.s32 %s52, 1
      %p56 = scmp.eq.s32.totalorder %s18, 1
      %p57 = scmp.ne.s32.totalorder %s52, %s54
      %p58 = scmp.eq.s32.totalorder %s18, 0
      %p59 = por %p57, %p58
      %p60 = scmp.ne.s32.totalorder %s52, %s54
      %p61 = scmp.eq.s32.totalorder %s23, 1
      %p62 = por %p60, %p61
      %p63 = scmp.ne.s32.totalorder %s54, %s55
      %p64 = scmp.eq.s32.totalorder %s23, 0
      %p65 = por %p63, %p64
      %p66 = scmp.ne.s32.totalorder %s54, %s55
      %p67 = scmp.eq.s32.totalorder %s24, 1
      %p68 = por %p66, %p67
      %p70 = scmp.ne.s32.totalorder %s55, %s69
      %p71 = scmp.eq.s32.totalorder %s24, 0
      %p72 = por %p70, %p71
      %s74 = sadd.s32 %s73, 1
      %p77 = scmp.eq.s32.totalorder %s18, 1
      %p78 = scmp.ne.s32.totalorder %s73, %s75
      %p79 = scmp.eq.s32.totalorder %s18, 0
      %p80 = por %p78, %p79
      %p81 = scmp.ne.s32.totalorder %s73, %s75
      %p82 = scmp.eq.s32.totalorder %s23, 1
      %p83 = por %p81, %p82
      %p84 = scmp.ne.s32.totalorder %s75, %s76
      %p85 = scmp.eq.s32.totalorder %s23, 0
      %p86 = por %p84, %p85
      %p87 = scmp.ne.s32.totalorder %s75, %s76
      %p88 = scmp.eq.s32.totalorder %s24, 1
      %p89 = por %p87, %p88
      %p91 = scmp.ne.s32.totalorder %s76, %s90
      %p92 = scmp.eq.s32.totalorder %s24, 0
      %p93 = por %p91, %p92
      %s95 = sadd.s32 %s94, 1
      %p98 = scmp.eq.s32.totalorder %s18, 1
      %p99 = scmp.ne.s32.totalorder %s94, %s96
      %p100 = scmp.eq.s32.totalorder %s18, 0
      %p101 = por %p99, %p100
      %p102 = scmp.ne.s32.totalorder %s94, %s96
      %p103 = scmp.eq.s32.totalorder %s23, 1
      %p104 = por %p102, %p103
      %p105 = scmp.ne.s32.totalorder %s96, %s97
      %p106 = scmp.eq.s32.totalorder %s23, 0
      %p107 = por %p105, %p106
      %p108 = scmp.ne.s32.totalorder %s96, %s97
      %p109 = scmp.eq.s32.totalorder %s24, 1
      %p110 = por %p108, %p109
      %p112 = scmp.ne.s32.totalorder %s97, %s111
      %p113 = scmp.eq.s32.totalorder %s24, 0
      %p114 = por %p112, %p113
      %s115 = ssub.s32 %s18, %s25
      %p116 = scmp.eq.s32.totalorder %s115, 0
      %s118 = sadd.s32 %s117, 1
      %s119 = scalar_select %p116, %s117, %s118
      %p122 = pneg %p116
      %p123 = scmp.eq.s32.totalorder %s18, 1
      %p124 = por %p122, %p123
      %p125 = scmp.ne.s32.totalorder %s117, %s120
      %p126 = scmp.eq.s32.totalorder %s18, 0
      %p127 = por %p125, %p126
      %p128 = scmp.ne.s32.totalorder %s117, %s120
      %p129 = scmp.eq.s32.totalorder %s23, 1
      %p130 = por %p128, %p129
      %p131 = scmp.ne.s32.totalorder %s120, %s121
      %p132 = scmp.eq.s32.totalorder %s23, 0
      %p133 = por %p131, %p132
      %p134 = scmp.ne.s32.totalorder %s120, %s121
      %p135 = scmp.eq.s32.totalorder %s24, 1
      %p136 = por %p134, %p135
      %p138 = scmp.ne.s32.totalorder %s121, %s137
      %p139 = scmp.eq.s32.totalorder %s24, 0
      %p140 = por %p138, %p139
      %p141 = scmp.le.s32.totalorder 1, %s18
      %p142 = scmp.lt.s32.totalorder %s18, 3
      %p143 = pnand %p141, %p142
      %p144 = pneg %p143
      // Predicated region
      $region9: #{tpu_custom_call.1} parent=5 // pred_check
        _
      $region10: #{tpu_custom_call.1} parent=5 // pred_check_branch
        %146 = sbr.rel (%p143) target = $region12
      $region11: #{tpu_custom_call.1} parent=5 // pred_region
        %s147 = ssub.s32 %s18, 1
        // Predicated region
        $region13: #{tpu_custom_call.1} parent=11 // pred_check
          %p148 = pneg %p65
        $region14: #{tpu_custom_call.1} parent=11 // pred_check_branch
          %150 = sbr.rel (%p148) target = $region16
        $region15: #{tpu_custom_call.1} parent=11 // pred_region
          %s152 = ssub.s32 128, 128
          %153 = vsyncadd [#allocation6], %s152
          %s155 = sshll.u32 [#allocation5], 4
          %s156 = int_to_ptr.vmem [resolvable:$true] %s155
          %158 = dma.hbm_to_vmem [thread:$0]  %s1, 128, %s156, [#allocation6]
        $region16: #{tpu_custom_call.1} parent=11 // pred_fallthru
          _
        // Predicated region
        $region17: #{tpu_custom_call.1} parent=11 // pred_check
          %p159 = pneg %p86
        $region18: #{tpu_custom_call.1} parent=11 // pred_check_branch
          %161 = sbr.rel (%p159) target = $region20
        $region19: #{tpu_custom_call.1} parent=11 // pred_region
          %s163 = ssub.s32 256, 256
          %164 = vsyncadd [#allocation6], %s163
          %s165 = sshll.u32 [#allocation7], 4
          %s166 = int_to_ptr.vmem [resolvable:$true] %s165
          %171 = dma.hbm_to_vmem [thread:$0]  %s2, 256, %s166, [#allocation6], 128, 128, 8
        $region20: #{tpu_custom_call.1} parent=11 // pred_fallthru
          _
        // Predicated region
        $region21: #{tpu_custom_call.1} parent=11 // pred_check
          %p172 = pneg %p107
        $region22: #{tpu_custom_call.1} parent=11 // pred_check_branch
          %174 = sbr.rel (%p172) target = $region24
        $region23: #{tpu_custom_call.1} parent=11 // pred_region
          %s176 = ssub.s32 16, 16
          %177 = vsyncadd [#allocation9], %s176
          %s179 = sshll.u32 [#allocation8], 4
          %s180 = int_to_ptr.vmem [resolvable:$true] %s179
          %182 = dma.hbm_to_vmem [thread:$0]  %s3, 16, %s180, [#allocation9]
        $region24: #{tpu_custom_call.1} parent=11 // pred_fallthru
          _
      $region12: #{tpu_custom_call.1} parent=5 // pred_fallthru
        _
      %p183 = scmp.lt.s32.totalorder %s18, 2
      // Predicated region
      $region25: #{tpu_custom_call.1} parent=5 // pred_check
        %p184 = pneg %p183
      $region26: #{tpu_custom_call.1} parent=5 // pred_check_branch
        %186 = sbr.rel (%p184) target = $region28
      $region27: #{tpu_custom_call.1} parent=5 // pred_region
        // Predicated region
        $region29: #{tpu_custom_call.1} parent=27 // pred_check
          %p187 = pneg %p38
        $region30: #{tpu_custom_call.1} parent=27 // pred_check_branch
          %189 = sbr.rel (%p187) target = $region32
        $region31: #{tpu_custom_call.1} parent=27 // pred_region
          %s190 = sand.u32 %s28, 1
          %s191 = scalar_lea.sflag [#allocation3], %s190
          %s192 = sand.u32 %s28, 1
          %s193 = smul.addr %s192, 16
          %s194 = scalar_lea.vmem [#allocation2], %s193
          %s196 = ssub.s32 256, 256
          %197 = vsyncadd %s191, %s196
          %s198 = smul.addr %s18, 2
          %s199 = smul.addr %s198, 128
          %s200 = scalar_lea.hbm %s0, %s199
          %s201 = sshll.u32 %s194, 4
          %s202 = int_to_ptr.vmem [resolvable:$true] %s201
          %207 = dma.hbm_to_vmem [thread:$0]  %s200, 256, %s202, %s191, 128, 128, 8
        $region32: #{tpu_custom_call.1} parent=27 // pred_fallthru
          _
      $region28: #{tpu_custom_call.1} parent=5 // pred_fallthru
        _
      %p208 = scmp.le.s32.totalorder 1, %s18
      %p209 = scmp.lt.s32.totalorder %s18, 3
      %p210 = pnand %p208, %p209
      %p211 = pneg %p210
      // Predicated region
      $region33: #{tpu_custom_call.1} parent=5 // pred_check
        _
      $region34: #{tpu_custom_call.1} parent=5 // pred_check_branch
        %213 = sbr.rel (%p210) target = $region36
      $region35: #{tpu_custom_call.1} parent=5 // pred_region
        %s214 = ssub.s32 %s18, 1
        %s215 = sand.u32 %s31, 1
        %s216 = scalar_lea.sflag [#allocation3], %s215
        %s217 = sand.u32 %s31, 1
        %s218 = smul.addr %s217, 16
        %s219 = scalar_lea.vmem [#allocation2], %s218
        // Predicated region
        $region37: #{tpu_custom_call.1} parent=35 // pred_check
          %p220 = pneg %p44
        $region38: #{tpu_custom_call.1} parent=35 // pred_check_branch
          %222 = sbr.rel (%p220) target = $region40
        $region39: #{tpu_custom_call.1} parent=35 // pred_region
          %223 = dma.done %s216, 256
        $region40: #{tpu_custom_call.1} parent=35 // pred_fallthru
          _
        // Predicated region
        $region41: #{tpu_custom_call.1} parent=35 // pred_check
          %p224 = pneg %p65
        $region42: #{tpu_custom_call.1} parent=35 // pred_check_branch
          %226 = sbr.rel (%p224) target = $region44
        $region43: #{tpu_custom_call.1} parent=35 // pred_region
          %227 = dma.done [#allocation6], 128
        $region44: #{tpu_custom_call.1} parent=35 // pred_fallthru
          _
        // Predicated region
        $region45: #{tpu_custom_call.1} parent=35 // pred_check
          %p228 = pneg %p86
        $region46: #{tpu_custom_call.1} parent=35 // pred_check_branch
          %230 = sbr.rel (%p228) target = $region48
        $region47: #{tpu_custom_call.1} parent=35 // pred_region
          %231 = dma.done [#allocation6], 256
        $region48: #{tpu_custom_call.1} parent=35 // pred_fallthru
          _
        // Predicated region
        $region49: #{tpu_custom_call.1} parent=35 // pred_check
          %p232 = pneg %p107
        $region50: #{tpu_custom_call.1} parent=35 // pred_check_branch
          %234 = sbr.rel (%p232) target = $region52
        $region51: #{tpu_custom_call.1} parent=35 // pred_region
          %235 = dma.done [#allocation9], 16
        $region52: #{tpu_custom_call.1} parent=35 // pred_fallthru
          _
        %s236 = sand.u32 %s31, 1
        %s237 = scalar_lea.sflag [#allocation3], %s236
        %s238 = sand.u32 %s31, 1
        %s239 = smul.addr %s238, 16
        %s240 = scalar_lea.vmem [#allocation2], %s239
        %p241 = pneg %p44
        %p242 = pneg %p41
        %p243 = pneg %p65
        %p244 = pneg %p62
        %p245 = pneg %p86
        %p246 = pneg %p83
        %p247 = pneg %p107
        %p248 = pneg %p104
        %p249 = pneg %p133
        %p250 = pneg %p130
        %s251 = sand.u32 %s120, 1
        %s252 = scalar_lea.sflag [#allocation4], %s251
        %s253 = sand.u32 %s120, 1
        %s254 = smul.addr %s253, 16
        %s255 = scalar_lea.vmem [#allocation10], %s254
        %v256 = vld [vmem:[#allocation5] sm:$0xff]
        %v257 = vld [vmem:[#allocation7] sm:$0xff]
        %v258 = vld [vmem:[#allocation7 + $0x8] sm:$0xff]
        %v259 = vld [vmem:[#allocation8] sm:$0x1]
        %v260 = vld [vmem:[%s219] sm:$0xff]
        %v261 = vld [vmem:[%s219 + $0x8] sm:$0xff]
        %vm262 = vcmask 64512
        %v264 = vsel %vm262, %v260, 0
        %v267 = vsel %vm262, %v261, 0
        %269 = vmatprep.subr.mxu0 0.0
        %270 = vmatpush1.msra.mxu0 %v256
        %271 = vmatprep.subr.mxu0 0.0
        %272 = vmatpush1.msra.mxu0 0.0
        %273 = vmatprep.subr.mxu0 0.0
        %274 = vmatpush1.msra.mxu0 0.0
        %275 = vmatprep.subr.mxu0 0.0
        %276 = vmatpush1.msra.mxu0 0.0
        %277 = vmatprep.subr.mxu0 0.0
        %278 = vmatpush1.msra.mxu0 0.0
        %279 = vmatprep.subr.mxu0 0.0
        %280 = vmatpush1.msra.mxu0 0.0
        %281 = vmatprep.subr.mxu0 0.0
        %282 = vmatpush1.msra.mxu0 0.0
        %283 = vmatprep.subr.mxu0 0.0
        %284 = vmatpush1.msra.mxu0 0.0
        %285 = vmatprep.subr.mxu0 0.0
        %286 = vmatpush1.msra.mxu0 0.0
        %287 = vmatprep.subr.mxu0 0.0
        %288 = vmatpush1.msra.mxu0 0.0
        %289 = vmatprep.subr.mxu0 0.0
        %290 = vmatpush1.msra.mxu0 0.0
        %291 = vmatprep.subr.mxu0 0.0
        %292 = vmatpush1.msra.mxu0 0.0
        %293 = vmatprep.subr.mxu0 0.0
        %294 = vmatpush1.msra.mxu0 0.0
        %295 = vmatprep.subr.mxu0 0.0
        %296 = vmatpush1.msra.mxu0 0.0
        %297 = vmatprep.subr.mxu0 0.0
        %298 = vmatpush1.msra.mxu0 0.0
        %299 = vmatprep.subr.mxu0 0.0
        %300 = vmatpush1.msra.mxu0 0.0
        %301 = vmatprep.subr.mxu0 0.0
        %302 = vmatpush1.msra.mxu0 0.0
        %303 = vmatprep.subr.mxu0 0.0
        %304 = vmatpush1.msra.mxu0 0.0
        %305 = vmatprep.subr.mxu0 0.0
        %306 = vmatpush1.msra.mxu0 0.0
        %307 = vmatprep.subr.mxu0 0.0
        %308 = vmatpush1.msra.mxu0 0.0
        %309 = vmatprep.subr.mxu0 0.0
        %310 = vmatpush1.msra.mxu0 0.0
        %311 = vmatprep.subr.mxu0 0.0
        %312 = vmatpush1.msra.mxu0 0.0
        %313 = vmatprep.subr.mxu0 0.0
        %314 = vmatpush1.msra.mxu0 0.0
        %315 = vmatprep.subr.mxu0 0.0
        %316 = vmatpush1.msra.mxu0 0.0
        %317 = vmatprep.subr.mxu0 0.0
        %318 = vmatpush1.msra.mxu0 0.0
        %319 = vmatprep.subr.mxu0 0.0
        %320 = vmatpush1.msra.mxu0 0.0
        %321 = vmatprep.subr.mxu0 0.0
        %322 = vmatpush1.msra.mxu0 0.0
        %323 = vmatprep.subr.mxu0 0.0
        %324 = vmatpush1.msra.mxu0 0.0
        %325 = vmatprep.subr.mxu0 0.0
        %326 = vmatpush1.msra.mxu0 0.0
        %327 = vmatprep.subr.mxu0 0.0
        %328 = vmatpush1.msra.mxu0 0.0
        %329 = vmatprep.subr.mxu0 0.0
        %330 = vmatpush1.msra.mxu0 0.0
        %331 = vmatprep.subr.mxu0 0.0
        %332 = vmatpush1.msra.mxu0 0.0
        %333 = vmatprep.mubr.f32.mxu0 0.0
        %334 = vmatmul.mubr.f32.gmra.mrb[0].mxu0 %v264
        %v335 = vpop.f32.mrb[0].mxu0
        %v336 = vadd.f32 0.0, %v335
        %v337 = vpop.f32.mrb[0].mxu0
        %338 = vmatprep.mubr.f32.mxu0 0.0
        %339 = vmatmul.mubr.f32.gmra.mrb[0].mxu0 %v267
        %v340 = vpop.f32.mrb[0].mxu0
        %v341 = vadd.f32 0.0, %v340
        %v342 = vpop.f32.mrb[0].mxu0
        %343 = vdwg.mxu0
        %344 = vmatprep.subr.mxu0 0.0
        %345 = vmatpush1.xpose.msra.mxu0 %v336
        %346 = vmatprep.subr.mxu0 0.0
        %347 = vmatpush1.xpose.msra.mxu0 %v341
        %348 = vmatprep.subr.mxu0 0.0
        %349 = vmatpush1.xpose.msra.mxu0 0.0
        %350 = vmatprep.subr.mxu0 0.0
        %351 = vmatpush1.xpose.msra.mxu0 0.0
        %352 = vmatprep.subr.mxu0 0.0
        %353 = vmatpush1.xpose.msra.mxu0 0.0
        %354 = vmatprep.subr.mxu0 0.0
        %355 = vmatpush1.xpose.msra.mxu0 0.0
        %356 = vmatprep.subr.mxu0 0.0
        %357 = vmatpush1.xpose.msra.mxu0 0.0
        %358 = vmatprep.subr.mxu0 0.0
        %359 = vmatpush1.xpose.msra.mxu0 0.0
        %360 = vmatprep.subr.mxu0 0.0
        %361 = vmatpush1.xpose.msra.mxu0 0.0
        %362 = vmatprep.subr.mxu0 0.0
        %363 = vmatpush1.xpose.msra.mxu0 0.0
        %364 = vmatprep.subr.mxu0 0.0
        %365 = vmatpush1.xpose.msra.mxu0 0.0
        %366 = vmatprep.subr.mxu0 0.0
        %367 = vmatpush1.xpose.msra.mxu0 0.0
        %368 = vmatprep.subr.mxu0 0.0
        %369 = vmatpush1.xpose.msra.mxu0 0.0
        %370 = vmatprep.subr.mxu0 0.0
        %371 = vmatpush1.xpose.msra.mxu0 0.0
        %372 = vmatprep.subr.mxu0 0.0
        %373 = vmatpush1.xpose.msra.mxu0 0.0
        %374 = vmatprep.subr.mxu0 0.0
        %375 = vmatpush1.xpose.msra.mxu0 0.0
        %376 = vmatprep.subr.mxu0 0.0
        %377 = vmatpush1.xpose.msra.mxu0 0.0
        %378 = vmatprep.subr.mxu0 0.0
        %379 = vmatpush1.xpose.msra.mxu0 0.0
        %380 = vmatprep.subr.mxu0 0.0
        %381 = vmatpush1.xpose.msra.mxu0 0.0
        %382 = vmatprep.subr.mxu0 0.0
        %383 = vmatpush1.xpose.msra.mxu0 0.0
        %384 = vmatprep.subr.mxu0 0.0
        %385 = vmatpush1.xpose.msra.mxu0 0.0
        %386 = vmatprep.subr.mxu0 0.0
        %387 = vmatpush1.xpose.msra.mxu0 0.0
        %388 = vmatprep.subr.mxu0 0.0
        %389 = vmatpush1.xpose.msra.mxu0 0.0
        %390 = vmatprep.subr.mxu0 0.0
        %391 = vmatpush1.xpose.msra.mxu0 0.0
        %392 = vmatprep.subr.mxu0 0.0
        %393 = vmatpush1.xpose.msra.mxu0 0.0
        %394 = vmatprep.subr.mxu0 0.0
        %395 = vmatpush1.xpose.msra.mxu0 0.0
        %396 = vmatprep.subr.mxu0 0.0
        %397 = vmatpush1.xpose.msra.mxu0 0.0
        %398 = vmatprep.subr.mxu0 0.0
        %399 = vmatpush1.xpose.msra.mxu0 0.0
        %400 = vmatprep.subr.mxu0 0.0
        %401 = vmatpush1.xpose.msra.mxu0 0.0
        %402 = vmatprep.subr.mxu0 0.0
        %403 = vmatpush1.xpose.msra.mxu0 0.0
        %404 = vmatprep.subr.mxu0 0.0
        %405 = vmatpush1.xpose.msra.mxu0 0.0
        %406 = vmatprep.subr.mxu0 0.0
        %407 = vmatpush1.xpose.msra.mxu0 0.0
        %408 = vmatprep.mubr.f32.mxu0 0.0
        %409 = vmatmul.mubr.f32.gmra.mrb[0].mxu0 %v336
        %v410 = vpop.f32.mrb[0].mxu0
        %v411 = vadd.f32 0.0, %v410
        %v412 = vpop.f32.mrb[0].mxu0
        %413 = vmatprep.mubr.f32.mxu0 0.0
        %414 = vmatmul.mubr.f32.gmra.mrb[0].mxu0 %v341
        %v415 = vpop.f32.mrb[0].mxu0
        %v416 = vadd.f32 0.0, %v415
        %v417 = vpop.f32.mrb[0].mxu0
        %418 = vdwg.mxu0
        %v419 = vmul.f32 %v411, %v257
        %v420 = vmul.f32 %v416, %v258
        %vm421 = vcmp.eq.f32.partialorder %v419, 0.0
        %vm422 = vcmp.eq.f32.partialorder %v420, 0.0
        %v423 = vsel %vm421, -1e+16, %v419
        %v424 = vsel %vm422, -1e+16, %v420
        %vm425 = vcmask 130048
        %v426 = vsel %vm425, %v423, -inf
        %427 = vmax.xlane.f32.xlu0 %v426
        %v428 = vpop.xlane.xlu0 %427
        %v429 = vsel %vm425, %v424, -inf
        %430 = vmax.xlane.f32.xlu0 %v429
        %v431 = vpop.xlane.xlu0 %430
        %v432 = vsub.f32 %v423, %v428
        %v433 = vsub.f32 %v424, %v431
        %v434 = vmul.f32 %v432, 1.442695
        %v435 = vpow.pop %v434
        %v436 = vmul.f32 %v433, 1.442695
        %v437 = vpow.pop %v436
        %v438 = vsel %vm425, %v435, 0.0
        %439 = vadd.xlane.f32.xlu0 %v438
        %v440 = vpop.xlane.xlu0 %439
        %v441 = vsel %vm425, %v437, 0.0
        %442 = vadd.xlane.f32.xlu0 %v441
        %v443 = vpop.xlane.xlu0 %442
        %v445 = vsel %vm425, %v435, 0
        %v448 = vsel %vm425, %v437, 0
        %450 = vmatprep.subr.mxu0 0.0
        %451 = vmatpush1.msra.mxu0 %v336
        %452 = vmatprep.subr.mxu0 0.0
        %453 = vmatpush1.msra.mxu0 %v341
        %454 = vmatprep.subr.mxu0 0.0
        %455 = vmatpush1.msra.mxu0 0.0
        %456 = vmatprep.subr.mxu0 0.0
        %457 = vmatpush1.msra.mxu0 0.0
        %458 = vmatprep.subr.mxu0 0.0
        %459 = vmatpush1.msra.mxu0 0.0
        %460 = vmatprep.subr.mxu0 0.0
        %461 = vmatpush1.msra.mxu0 0.0
        %462 = vmatprep.subr.mxu0 0.0
        %463 = vmatpush1.msra.mxu0 0.0
        %464 = vmatprep.subr.mxu0 0.0
        %465 = vmatpush1.msra.mxu0 0.0
        %466 = vmatprep.subr.mxu0 0.0
        %467 = vmatpush1.msra.mxu0 0.0
        %468 = vmatprep.subr.mxu0 0.0
        %469 = vmatpush1.msra.mxu0 0.0
        %470 = vmatprep.subr.mxu0 0.0
        %471 = vmatpush1.msra.mxu0 0.0
        %472 = vmatprep.subr.mxu0 0.0
        %473 = vmatpush1.msra.mxu0 0.0
        %474 = vmatprep.subr.mxu0 0.0
        %475 = vmatpush1.msra.mxu0 0.0
        %476 = vmatprep.subr.mxu0 0.0
        %477 = vmatpush1.msra.mxu0 0.0
        %478 = vmatprep.subr.mxu0 0.0
        %479 = vmatpush1.msra.mxu0 0.0
        %480 = vmatprep.subr.mxu0 0.0
        %481 = vmatpush1.msra.mxu0 0.0
        %482 = vmatprep.subr.mxu0 0.0
        %483 = vmatpush1.msra.mxu0 0.0
        %484 = vmatprep.subr.mxu0 0.0
        %485 = vmatpush1.msra.mxu0 0.0
        %486 = vmatprep.subr.mxu0 0.0
        %487 = vmatpush1.msra.mxu0 0.0
        %488 = vmatprep.subr.mxu0 0.0
        %489 = vmatpush1.msra.mxu0 0.0
        %490 = vmatprep.subr.mxu0 0.0
        %491 = vmatpush1.msra.mxu0 0.0
        %492 = vmatprep.subr.mxu0 0.0
        %493 = vmatpush1.msra.mxu0 0.0
        %494 = vmatprep.subr.mxu0 0.0
        %495 = vmatpush1.msra.mxu0 0.0
        %496 = vmatprep.subr.mxu0 0.0
        %497 = vmatpush1.msra.mxu0 0.0
        %498 = vmatprep.subr.mxu0 0.0
        %499 = vmatpush1.msra.mxu0 0.0
        %500 = vmatprep.subr.mxu0 0.0
        %501 = vmatpush1.msra.mxu0 0.0
        %502 = vmatprep.subr.mxu0 0.0
        %503 = vmatpush1.msra.mxu0 0.0
        %504 = vmatprep.subr.mxu0 0.0
        %505 = vmatpush1.msra.mxu0 0.0
        %506 = vmatprep.subr.mxu0 0.0
        %507 = vmatpush1.msra.mxu0 0.0
        %508 = vmatprep.subr.mxu0 0.0
        %509 = vmatpush1.msra.mxu0 0.0
        %510 = vmatprep.subr.mxu0 0.0
        %511 = vmatpush1.msra.mxu0 0.0
        %512 = vmatprep.subr.mxu0 0.0
        %513 = vmatpush1.msra.mxu0 0.0
        %514 = vmatprep.mubr.f32.mxu0 0.0
        %515 = vmatmul.mubr.f32.gmra.mrb[0].mxu0 %v445
        %v516 = vpop.f32.mrb[0].mxu0
        %v517 = vadd.f32 0.0, %v516
        %v518 = vpop.f32.mrb[0].mxu0
        %519 = vmatprep.mubr.f32.mxu0 0.0
        %520 = vmatmul.mubr.f32.gmra.mrb[0].mxu0 %v448
        %v521 = vpop.f32.mrb[0].mxu0
        %v522 = vadd.f32 0.0, %v521
        %v523 = vpop.f32.mrb[0].mxu0
        %524 = vdwg.mxu0
        %v525 = vrcp.pop %v440
        %v526 = vrcp.pop %v443
        %v527 = vmul.f32 %v517, %v525
        %v528 = vmul.f32 %v522, %v526
        %v530 = vlaneseq
        %v531 = vshrl.u32 %v530, 7
        %v532 = vsub.s32 0, %v531
        %v533 = vrot.slane %v259, %v532
        %v535 = vadd.f32 %v527, %v533
        %v536 = vadd.f32 %v528, %v533
        %537 = vst [vmem:[%s255] sm:$0xff] %v535
        %538 = vst [vmem:[%s255 + $0x8] sm:$0xff] %v536
        %s539 = sand.u32 %s120, 1
        %s540 = scalar_lea.sflag [#allocation4], %s539
        %s541 = sand.u32 %s120, 1
        %s542 = smul.addr %s541, 16
        %s543 = scalar_lea.vmem [#allocation10], %s542
        // Predicated region
        $region53: #{tpu_custom_call.1} parent=35 // pred_check
          %p544 = pneg %p130
        $region54: #{tpu_custom_call.1} parent=35 // pred_check_branch
          %546 = sbr.rel (%p544) target = $region56
        $region55: #{tpu_custom_call.1} parent=35 // pred_region
          %s548 = ssub.s32 256, 256
          %549 = vsyncadd %s540, %s548
          %s550 = smul.addr %s23, 2
          %s551 = smul.addr %s550, 128
          %s552 = scalar_lea.hbm %s4, %s551
          %s553 = sshll.u32 %s543, 4
          %s554 = int_to_ptr.vmem [resolvable:$true] %s553
          %559 = dma.vmem_to_hbm [thread:$0]  %s554, 256, %s552, %s540, 128, 128, 8
        $region56: #{tpu_custom_call.1} parent=35 // pred_fallthru
          _
      $region36: #{tpu_custom_call.1} parent=5 // pred_fallthru
        _
      %p560 = scmp.le.s32.totalorder 2, %s18
      // Predicated region
      $region57: #{tpu_custom_call.1} parent=5 // pred_check
        %p561 = pneg %p560
      $region58: #{tpu_custom_call.1} parent=5 // pred_check_branch
        %563 = sbr.rel (%p561) target = $region60
      $region59: #{tpu_custom_call.1} parent=5 // pred_region
        %s564 = ssub.s32 %s18, 2
        // Predicated region
        $region61: #{tpu_custom_call.1} parent=59 // pred_check
          %p565 = pneg %p136
        $region62: #{tpu_custom_call.1} parent=59 // pred_check_branch
          %567 = sbr.rel (%p565) target = $region64
        $region63: #{tpu_custom_call.1} parent=59 // pred_region
          %s568 = sand.u32 %s121, 1
          %s569 = scalar_lea.sflag [#allocation4], %s568
          %s570 = sand.u32 %s121, 1
          %s571 = smul.addr %s570, 16
          %s572 = scalar_lea.vmem [#allocation10], %s571
          %573 = dma.done %s569, 256
        $region64: #{tpu_custom_call.1} parent=59 // pred_fallthru
          _
      $region60: #{tpu_custom_call.1} parent=5 // pred_fallthru
        _
    $region6: #{tpu_custom_call.1} parent=1 // loop_footer
      %s22 = sadd.s32 1, %s18
    $region7: #{tpu_custom_call.1} parent=1 // loop_footer_branch
      %17 = sbr.rel target = $region3
    $region8: #{tpu_custom_call.1} parent=1 // loop_exit
      _
    %574 = vsyncpa [#allocation3], 1
    %s575 = scalar_lea.sflag [#allocation3], 1
    %576 = vsyncpa %s575, 1
    %577 = vsyncpa [#allocation6], 1
    %578 = vsyncpa [#allocation9], 1
    %579 = vsyncpa [#allocation4], 1
    %s580 = scalar_lea.sflag [#allocation4], 1
    %581 = vsyncpa %s580, 1

</llo_original>
